<compile_context>
chip_gen: v7x
topology: tpu7x:2x2x1
jax: 0.10.0
libtpu: 0.0.40
codegen_flags: <defaults>
</compile_context>

<pallas_src>
import functools

import jax
import jax.numpy as jnp
from jax.experimental import pallas as pl
from jax.experimental.pallas import tpu as pltpu


def _round_up(x, m):
    return ((x + m - 1) // m) * m


# ---------------------------------------------------------------------------
# Kernel: one MXU matmul per (batch-tile, n-tile) grid step + fused bias add.
# ---------------------------------------------------------------------------
def _linear_kernel(x_ref, wt_ref, b_ref, o_ref):
    # x_ref: (tm, d_pad), wt_ref: (d_pad, tn), b_ref: (1, tn), o_ref: (tm, tn)
    acc = jnp.dot(x_ref[...], wt_ref[...], preferred_element_type=jnp.float32)
    o_ref[...] = (acc + b_ref[...]).astype(o_ref.dtype)


# ---------------------------------------------------------------------------
# One-time parameter preparation (hoisted out of the per-step forward):
# transpose + zero-pad W to a lane/sublane-dense (d_pad, n_pad) W^T and pad
# bias to (1, n_pad).  Padded rows/cols are zero, so results stay exact.
# ---------------------------------------------------------------------------
def prepare_classifier_params(w, b):
    n_way, dim = w.shape
    d_pad = _round_up(dim, 128)
    n_pad = _round_up(n_way, 128)
    wt_p = jnp.zeros((d_pad, n_pad), w.dtype).at[:dim, :n_way].set(w.T)
    b_p = jnp.zeros((1, n_pad), b.dtype).at[0, :n_way].set(b)
    return wt_p, b_p


@functools.partial(
    jax.jit,
    static_argnames=("n_way", "tm_max", "use_pallas", "single_buffer_invariants"),
)
def classifier_forward(x, wt_p, b_p, *, n_way, tm_max=512, use_pallas=True,
                       single_buffer_invariants=True):
    """y = x @ W^T + b using pre-padded params from prepare_classifier_params.

    x:    (batch, dim) float32
    wt_p: (d_pad, n_pad) padded W^T        (from prepare_classifier_params)
    b_p:  (1, n_pad)     padded bias       (from prepare_classifier_params)
    returns (batch, n_way) float32
    """
    batch, dim = x.shape
    d_pad, n_pad = wt_p.shape
    assert dim <= d_pad and n_way <= n_pad

    # Tiny-shape fast path: launch/pad overhead dwarfs one MXU pass.
    if not use_pallas:
        y = x @ wt_p[:dim, :] + b_p
        return y[:, :n_way]

    # ------------------- tile selection (static Python) -------------------
    m8 = _round_up(batch, 8)

    # Batch tile: multiple of 8, capped by tm_max and a VMEM budget for the
    # double-buffered x tile; forced to >=2 grid steps when the batch is big
    # enough so both v7x TensorCores get work.
    x_budget = 16 * 1024 * 1024
    tm_cap = max(8, (tm_max // 8) * 8)
    tm_vmem = max(8, ((x_budget // (2 * 4 * d_pad)) // 8) * 8)
    tm = min(tm_cap, tm_vmem, m8)
    if m8 <= tm and m8 >= 16:
        tm = _round_up((m8 + 1) // 2, 8)          # >=2 batch tiles (v7x megacore)
    tm = max(8, min(tm, m8))
    m_pad = _round_up(m8, tm)

    # N tile: keep the W^T block under a VMEM budget; n_pad is a multiple of
    # 128 so tn=128 always divides it as a fallback.
    w_budget = 16 * 1024 * 1024
    tn_cap = max(128, ((w_budget // (4 * d_pad)) // 128) * 128)
    if n_pad <= tn_cap:
        tn = n_pad
    else:
        tn = 128
        for cand in range(tn_cap, 127, -128):
            if n_pad % cand == 0:
                tn = cand
                break
    # TODO(synk): if dim grows so large that d_pad*128*4 exceeds the budget,
    # add a K grid axis ("arbitrary") with an f32 accumulator scratch instead
    # of keeping full-K blocks resident.

    m_grid = m_pad // tm
    n_grid = n_pad // tn
    grid = (m_grid, n_grid)

    # Grid-invariant operands (constant index_map) only need one buffer.
    invariant = (n_grid == 1) and single_buffer_invariants
    inv_mode = pl.Buffered(1) if invariant else None
    w_bufs = 1 if invariant else 2

    # ------------------- conditional input padding ------------------------
    if batch == m_pad and dim == d_pad:
        x_p = x                                    # aligned: no extra HBM traffic
    else:
        x_p = jnp.pad(x, ((0, m_pad - batch), (0, d_pad - dim)))

    # ------------------- VMEM budget for the compiler ---------------------
    vmem_bytes = (2 * tm * d_pad * 4               # x tiles (double-buffered)
                  + w_bufs * d_pad * tn * 4        # W^T block(s)
                  + w_bufs * tn * 4                # bias block(s)
                  + 2 * tm * tn * 4)               # output tiles (double-buffered)
    vmem_limit = min(max(int(1.25 * vmem_bytes), 16 * 1024 * 1024),
                     128 * 1024 * 1024)

    out = pl.pallas_call(
        _linear_kernel,
        out_shape=jax.ShapeDtypeStruct((m_pad, n_pad), x.dtype),
        grid=grid,
        in_specs=[
            pl.BlockSpec((tm, d_pad), lambda i, j: (i, 0)),                    # x
            pl.BlockSpec((d_pad, tn), lambda i, j: (0, j), pipeline_mode=inv_mode),  # W^T
            pl.BlockSpec((1, tn), lambda i, j: (0, j), pipeline_mode=inv_mode),      # bias
        ],
        out_specs=pl.BlockSpec((tm, tn), lambda i, j: (i, j)),
        compiler_params=pltpu.CompilerParams(
            dimension_semantics=("parallel", "parallel"),
            vmem_limit_bytes=vmem_limit,
        ),
        cost_estimate=pl.CostEstimate(
            flops=2 * m_pad * d_pad * n_pad + m_pad * n_pad,
            transcendentals=0,
            bytes_accessed=4 * (m_pad * d_pad + d_pad * n_pad + n_pad
                                + m_pad * n_pad),
        ),
    )(x_p, wt_p, b_p)

    # Slice only when padding actually happened (avoids an extra HBM pass).
    if batch == m_pad and n_way == n_pad:
        return out
    return out[:batch, :n_way]


if __name__ == "__main__":
    # Small shapes consistent with Classifier(dim, n_way).
    batch, dim, n_way = 8, 32, 5

    key = jax.random.PRNGKey(0)
    kx, kw, kb = jax.random.split(key, 3)

    x = jax.random.normal(kx, (batch, dim), dtype=jnp.float32)
    bound = 1.0 / (dim ** 0.5)
    w = jax.random.uniform(kw, (n_way, dim), jnp.float32, -bound, bound)
    b = jax.random.uniform(kb, (n_way,), jnp.float32, -bound, bound)

    # Parameter prep happens ONCE, outside the per-step forward.
    wt_p, b_p = jax.block_until_ready(prepare_classifier_params(w, b))

    try:
        y = classifier_forward(x, wt_p, b_p, n_way=n_way)
    except Exception:
        # Defensive fallback if this JAX build rejects pl.Buffered(1) on a
        # top-level pallas_call BlockSpec; semantics are identical.
        y = classifier_forward(x, wt_p, b_p, n_way=n_way,
                               single_buffer_invariants=False)
    y = jax.block_until_ready(y)

    # Correctness check against plain-JAX reference.
    y_ref = x @ w.T + b
    assert y.shape == (batch, n_way)
    assert jnp.allclose(y, y_ref, atol=1e-5, rtol=1e-5)

    print("KERNEL_OK")
</pallas_src>

<mosaic_0001>
module attributes {stable_mosaic.version = 11 : i64} {
  func.func @_linear_kernel(%arg0: i32, %arg1: i32, %arg2: memref<8x128xf32, #tpu.memory_space<vmem>>, %arg3: memref<128x128xf32, #tpu.memory_space<vmem>>, %arg4: memref<1x128xf32, #tpu.memory_space<vmem>>, %arg5: memref<8x128xf32, #tpu.memory_space<vmem>>) attributes {dimension_semantics = [#tpu.dimension_semantics<parallel>, #tpu.dimension_semantics<parallel>], iteration_bounds = array<i64: 1, 1>, scalar_prefetch = 0 : i64, scratch_operands = 0 : i64, tpu.core_type = #tpu.core_type<tc>, window_params = [{transform_indices = @transform_0, window_bounds = array<i64: 8, 128>}, {pipeline_mode = #tpu.pipeline_mode<synchronous>, transform_indices = @transform_1, window_bounds = array<i64: 128, 128>}, {pipeline_mode = #tpu.pipeline_mode<synchronous>, transform_indices = @transform_2, window_bounds = array<i64: 1, 128>}, {transform_indices = @transform_3, window_bounds = array<i64: 8, 128>}]} {
    %c0 = arith.constant 0 : index
    %c0_0 = arith.constant 0 : index
    %0 = vector.load %arg2[%c0, %c0_0] : memref<8x128xf32, #tpu.memory_space<vmem>>, vector<8x128xf32>
    %c0_1 = arith.constant 0 : index
    %c0_2 = arith.constant 0 : index
    %1 = vector.load %arg3[%c0_1, %c0_2] : memref<128x128xf32, #tpu.memory_space<vmem>>, vector<128x128xf32>
    %cst = arith.constant dense<0.000000e+00> : vector<8x128xf32>
    %2 = tpu.matmul %0, %1, %cst {dimension_numbers = #tpu.dot_dimension_numbers<[1], [0], [0], [1], [0, 0, 1, 1], [], []>} : vector<8x128xf32>, vector<128x128xf32>, vector<8x128xf32> -> vector<8x128xf32>
    %c0_3 = arith.constant 0 : index
    %c0_4 = arith.constant 0 : index
    %3 = vector.load %arg4[%c0_3, %c0_4] : memref<1x128xf32, #tpu.memory_space<vmem>>, vector<1x128xf32>
    %4 = vector.broadcast %3 : vector<1x128xf32> to vector<8x128xf32>
    %5 = arith.addf %2, %4 : vector<8x128xf32>
    %c0_5 = arith.constant 0 : index
    %c0_6 = arith.constant 0 : index
    %6 = vector.load %arg5[%c0_5, %c0_6] : memref<8x128xf32, #tpu.memory_space<vmem>>, vector<8x128xf32>
    tpu.vector_store %arg5[%c0_5, %c0_6], %5 {strides = array<i32>} : memref<8x128xf32, #tpu.memory_space<vmem>>, vector<8x128xf32>,
    return
  }
  func.func @transform_0(%arg0: i32, %arg1: i32) -> (i32, i32) {
    %c0_i32 = arith.constant 0 : i32
    %c0_i32_0 = arith.constant 0 : i32
    return %arg0, %c0_i32 : i32, i32
  }
  func.func @transform_1(%arg0: i32, %arg1: i32) -> (i32, i32) {
    %c0_i32 = arith.constant 0 : i32
    %c0_i32_0 = arith.constant 0 : i32
    return %c0_i32, %arg1 : i32, i32
  }
  func.func @transform_2(%arg0: i32, %arg1: i32) -> (i32, i32) {
    %c0_i32 = arith.constant 0 : i32
    %c0_i32_0 = arith.constant 0 : i32
    return %c0_i32, %arg1 : i32, i32
  }
  func.func @transform_3(%arg0: i32, %arg1: i32) -> (i32, i32) {
    %c0_i32 = arith.constant 0 : i32
    return %arg0, %arg1 : i32, i32
  }
}

module attributes {stable_mosaic.version = 11 : i64} {
  func.func @_linear_kernel(%arg0: i32, %arg1: i32, %arg2: memref<8x128xf32, #tpu.memory_space<vmem>>, %arg3: memref<128x128xf32, #tpu.memory_space<vmem>>, %arg4: memref<1x128xf32, #tpu.memory_space<vmem>>, %arg5: memref<8x128xf32, #tpu.memory_space<vmem>>) attributes {dimension_semantics = [#tpu.dimension_semantics<parallel>, #tpu.dimension_semantics<parallel>], iteration_bounds = array<i64: 1, 1>, scalar_prefetch = 0 : i64, scratch_operands = 0 : i64, tpu.core_type = #tpu.core_type<tc>, window_params = [{transform_indices = @transform_0, window_bounds = array<i64: 8, 128>}, {transform_indices = @transform_1, window_bounds = array<i64: 128, 128>}, {transform_indices = @transform_2, window_bounds = array<i64: 1, 128>}, {transform_indices = @transform_3, window_bounds = array<i64: 8, 128>}]} {
    %c0 = arith.constant 0 : index
    %c0_0 = arith.constant 0 : index
    %0 = vector.load %arg2[%c0, %c0_0] : memref<8x128xf32, #tpu.memory_space<vmem>>, vector<8x128xf32>
    %c0_1 = arith.constant 0 : index
    %c0_2 = arith.constant 0 : index
    %1 = vector.load %arg3[%c0_1, %c0_2] : memref<128x128xf32, #tpu.memory_space<vmem>>, vector<128x128xf32>
    %cst = arith.constant dense<0.000000e+00> : vector<8x128xf32>
    %2 = tpu.matmul %0, %1, %cst {dimension_numbers = #tpu.dot_dimension_numbers<[1], [0], [0], [1], [0, 0, 1, 1], [], []>} : vector<8x128xf32>, vector<128x128xf32>, vector<8x128xf32> -> vector<8x128xf32>
    %c0_3 = arith.constant 0 : index
    %c0_4 = arith.constant 0 : index
    %3 = vector.load %arg4[%c0_3, %c0_4] : memref<1x128xf32, #tpu.memory_space<vmem>>, vector<1x128xf32>
    %4 = vector.broadcast %3 : vector<1x128xf32> to vector<8x128xf32>
    %5 = arith.addf %2, %4 : vector<8x128xf32>
    %c0_5 = arith.constant 0 : index
    %c0_6 = arith.constant 0 : index
    %6 = vector.load %arg5[%c0_5, %c0_6] : memref<8x128xf32, #tpu.memory_space<vmem>>, vector<8x128xf32>
    tpu.vector_store %arg5[%c0_5, %c0_6], %5 {strides = array<i32>} : memref<8x128xf32, #tpu.memory_space<vmem>>, vector<8x128xf32>,
    return
  }
  func.func @transform_0(%arg0: i32, %arg1: i32) -> (i32, i32) {
    %c0_i32 = arith.constant 0 : i32
    %c0_i32_0 = arith.constant 0 : i32
    return %arg0, %c0_i32 : i32, i32
  }
  func.func @transform_1(%arg0: i32, %arg1: i32) -> (i32, i32) {
    %c0_i32 = arith.constant 0 : i32
    %c0_i32_0 = arith.constant 0 : i32
    return %c0_i32, %arg1 : i32, i32
  }
  func.func @transform_2(%arg0: i32, %arg1: i32) -> (i32, i32) {
    %c0_i32 = arith.constant 0 : i32
    %c0_i32_0 = arith.constant 0 : i32
    return %c0_i32, %arg1 : i32, i32
  }
  func.func @transform_3(%arg0: i32, %arg1: i32) -> (i32, i32) {
    %c0_i32 = arith.constant 0 : i32
    return %arg0, %arg1 : i32, i32
  }
}

</mosaic_0001>

<llo_original>
// kernel: classifier_forward.1
$region0: #{classifier_forward.1}
  #allocation0 [shape = 'u32[]', space=smem, size = 0x4, offset = 0x4, fixed_abs, tag = 'smem constant byte address 0x4 - core index']
  #allocation1 [shape = 'u32[144,128]{1,0:T(1,128)}', space=vmem, size = 0x12000, scoped, tag = 'internal scratch']
  %s0 = inlined_call_operand.vmem [shape: f32[8,128], index: 0, kind: input, shape index: {}]
  %s1 = inlined_call_operand.hbm [shape: f32[128,128], index: 1, kind: input, shape index: {}]
  %s2 = inlined_call_operand.vmem [shape: f32[1,128], index: 2, kind: input, shape index: {}]
  %s3 = inlined_call_operand.hbm [shape: f32[8,128], index: 3, kind: output, shape index: {}]
  %s4 = sld [smem:[#allocation0]]
  $region26: #{classifier_forward.1} parent=0
    _
  %s6 = ssub.s32 1, %s4
  %s7 = scalar_select 0, %s6, %s4
  $region1: #{classifier_forward.1} parent=0
    #allocation2 [shape = 'u8[65536]{0}', space=vmem, size = 0x10000, scoped, tag = 'input window, operand 1, single buffered']
    #allocation3 [shape = 's32[1]{0}', space=sflag, size = 0x4, scoped, tag = 'scoped memory for classifier_forward.1']
    #allocation4 [shape = 's32[1]{0}', space=sflag, size = 0x4, scoped, tag = 'scoped memory for classifier_forward.1']
    #allocation5 [shape = 'u8[4096]{0}', space=vmem, size = 0x1000, scoped, tag = 'output window, operand 0, single buffered']
    %8 = vsyncpa [#allocation3], 0
    %9 = vsyncpa [#allocation4], 0
    // Predicated region
    $region2: #{classifier_forward.1} parent=1 // pred_check
      _
    $region3: #{classifier_forward.1} parent=1 // pred_check_branch
      %11 = sbr.rel (0) target = $region5
    $region4: #{classifier_forward.1} parent=1 // pred_region
      _
    $region5: #{classifier_forward.1} parent=1 // pred_fallthru
      _
    // Predicated region
    $region6: #{classifier_forward.1} parent=1 // pred_check
      _
    $region7: #{classifier_forward.1} parent=1 // pred_check_branch
      %13 = sbr.rel (0) target = $region9
    $region8: #{classifier_forward.1} parent=1 // pred_region
      %s15 = ssub.s32 2048, 2048
      %16 = vsyncadd [#allocation3], %s15
      %s17 = sshll.u32 [#allocation2], 4
      %s18 = int_to_ptr.vmem [resolvable:$true] %s17
      %23 = dma.hbm_to_vmem [thread:$0]  %s1, 2048, %s18, [#allocation3], 128, 128, 8
    $region9: #{classifier_forward.1} parent=1 // pred_fallthru
      _
    // Predicated region
    $region10: #{classifier_forward.1} parent=1 // pred_check
      _
    $region11: #{classifier_forward.1} parent=1 // pred_check_branch
      %25 = sbr.rel (0) target = $region13
    $region12: #{classifier_forward.1} parent=1 // pred_region
      _
    $region13: #{classifier_forward.1} parent=1 // pred_fallthru
      _
    // Predicated region
    $region14: #{classifier_forward.1} parent=1 // pred_check
      _
    $region15: #{classifier_forward.1} parent=1 // pred_check_branch
      %27 = sbr.rel (0) target = $region17
    $region16: #{classifier_forward.1} parent=1 // pred_region
      %28 = dma.done [#allocation3], 2048
    $region17: #{classifier_forward.1} parent=1 // pred_fallthru
      _
    %v29 = vld [vmem:[%s0] sm:$0xff]
    %v30 = vld [vmem:[#allocation2] sm:$0xff]
    %v31 = vld [vmem:[#allocation2 + $0x8] sm:$0xff]
    %v32 = vld [vmem:[#allocation2 + $0x10] sm:$0xff]
    %v33 = vld [vmem:[#allocation2 + $0x18] sm:$0xff]
    %v34 = vld [vmem:[#allocation2 + $0x20] sm:$0xff]
    %v35 = vld [vmem:[#allocation2 + $0x28] sm:$0xff]
    %v36 = vld [vmem:[#allocation2 + $0x30] sm:$0xff]
    %v37 = vld [vmem:[#allocation2 + $0x38] sm:$0xff]
    %v38 = vld [vmem:[#allocation2 + $0x40] sm:$0xff]
    %v39 = vld [vmem:[#allocation2 + $0x48] sm:$0xff]
    %v40 = vld [vmem:[#allocation2 + $0x50] sm:$0xff]
    %v41 = vld [vmem:[#allocation2 + $0x58] sm:$0xff]
    %v42 = vld [vmem:[#allocation2 + $0x60] sm:$0xff]
    %v43 = vld [vmem:[#allocation2 + $0x68] sm:$0xff]
    %v44 = vld [vmem:[#allocation2 + $0x70] sm:$0xff]
    %v45 = vld [vmem:[#allocation2 + $0x78] sm:$0xff]
    %v46 = vld [vmem:[%s2] sm:$0x1]
    %v48 = vlaneseq
    %v49 = vshrl.u32 %v48, 7
    %v50 = vsub.s32 0, %v49
    %v51 = vrot.slane %v46, %v50
    %53 = vmatprep.subr.mxu0 0.0
    %54 = vmatpush1.msra.mxu0 %v30
    %55 = vmatprep.subr.mxu0 0.0
    %56 = vmatpush1.msra.mxu0 %v31
    %57 = vmatprep.subr.mxu0 0.0
    %58 = vmatpush1.msra.mxu0 %v32
    %59 = vmatprep.subr.mxu0 0.0
    %60 = vmatpush1.msra.mxu0 %v33
    %61 = vmatprep.subr.mxu0 0.0
    %62 = vmatpush1.msra.mxu0 %v34
    %63 = vmatprep.subr.mxu0 0.0
    %64 = vmatpush1.msra.mxu0 %v35
    %65 = vmatprep.subr.mxu0 0.0
    %66 = vmatpush1.msra.mxu0 %v36
    %67 = vmatprep.subr.mxu0 0.0
    %68 = vmatpush1.msra.mxu0 %v37
    %69 = vmatprep.subr.mxu0 0.0
    %70 = vmatpush1.msra.mxu0 %v38
    %71 = vmatprep.subr.mxu0 0.0
    %72 = vmatpush1.msra.mxu0 %v39
    %73 = vmatprep.subr.mxu0 0.0
    %74 = vmatpush1.msra.mxu0 %v40
    %75 = vmatprep.subr.mxu0 0.0
    %76 = vmatpush1.msra.mxu0 %v41
    %77 = vmatprep.subr.mxu0 0.0
    %78 = vmatpush1.msra.mxu0 %v42
    %79 = vmatprep.subr.mxu0 0.0
    %80 = vmatpush1.msra.mxu0 %v43
    %81 = vmatprep.subr.mxu0 0.0
    %82 = vmatpush1.msra.mxu0 %v44
    %83 = vmatprep.subr.mxu0 0.0
    %84 = vmatpush1.msra.mxu0 %v45
    %85 = vmatprep.subr.mxu0 0.0
    %86 = vmatpush1.msra.mxu0 0.0
    %87 = vmatprep.subr.mxu0 0.0
    %88 = vmatpush1.msra.mxu0 0.0
    %89 = vmatprep.subr.mxu0 0.0
    %90 = vmatpush1.msra.mxu0 0.0
    %91 = vmatprep.subr.mxu0 0.0
    %92 = vmatpush1.msra.mxu0 0.0
    %93 = vmatprep.subr.mxu0 0.0
    %94 = vmatpush1.msra.mxu0 0.0
    %95 = vmatprep.subr.mxu0 0.0
    %96 = vmatpush1.msra.mxu0 0.0
    %97 = vmatprep.subr.mxu0 0.0
    %98 = vmatpush1.msra.mxu0 0.0
    %99 = vmatprep.subr.mxu0 0.0
    %100 = vmatpush1.msra.mxu0 0.0
    %101 = vmatprep.subr.mxu0 0.0
    %102 = vmatpush1.msra.mxu0 0.0
    %103 = vmatprep.subr.mxu0 0.0
    %104 = vmatpush1.msra.mxu0 0.0
    %105 = vmatprep.subr.mxu0 0.0
    %106 = vmatpush1.msra.mxu0 0.0
    %107 = vmatprep.subr.mxu0 0.0
    %108 = vmatpush1.msra.mxu0 0.0
    %109 = vmatprep.subr.mxu0 0.0
    %110 = vmatpush1.msra.mxu0 0.0
    %111 = vmatprep.subr.mxu0 0.0
    %112 = vmatpush1.msra.mxu0 0.0
    %113 = vmatprep.subr.mxu0 0.0
    %114 = vmatpush1.msra.mxu0 0.0
    %115 = vmatprep.subr.mxu0 0.0
    %116 = vmatpush1.msra.mxu0 0.0
    %117 = vmatprep.mubr.f32.mxu0 0.0
    %118 = vmatmul.mubr.f32.gmra.mrb[0].mxu0 %v29
    %v119 = vpop.f32.mrb[0].mxu0
    %v120 = vadd.f32 %v51, %v119
    %v121 = vpop.f32.mrb[0].mxu0
    %122 = vdwg.mxu0
    %123 = vst [vmem:[#allocation5] sm:$0xff] %v120
    // Predicated region
    $region18: #{classifier_forward.1} parent=1 // pred_check
      _
    $region19: #{classifier_forward.1} parent=1 // pred_check_branch
      %125 = sbr.rel (0) target = $region21
    $region20: #{classifier_forward.1} parent=1 // pred_region
      %s127 = ssub.s32 128, 128
      %128 = vsyncadd [#allocation4], %s127
      %s130 = sshll.u32 [#allocation5], 4
      %s131 = int_to_ptr.vmem [resolvable:$true] %s130
      %133 = dma.vmem_to_hbm [thread:$0]  %s131, 128, %s3, [#allocation4]
    $region21: #{classifier_forward.1} parent=1 // pred_fallthru
      _
    // Predicated region
    $region22: #{classifier_forward.1} parent=1 // pred_check
      _
    $region23: #{classifier_forward.1} parent=1 // pred_check_branch
      %135 = sbr.rel (0) target = $region25
    $region24: #{classifier_forward.1} parent=1 // pred_region
      %136 = dma.done [#allocation4], 128
    $region25: #{classifier_forward.1} parent=1 // pred_fallthru
      _
    %137 = vsyncpa [#allocation3], 1
    %138 = vsyncpa [#allocation4], 1

// kernel: classifier_forward.1
$region0: #{classifier_forward.1}
  #allocation0 [shape = 'u32[]', space=smem, size = 0x4, offset = 0x4, fixed_abs, tag = 'smem constant byte address 0x4 - core index']
  #allocation1 [shape = 'u32[144,128]{1,0:T(1,128)}', space=vmem, size = 0x12000, scoped, tag = 'internal scratch']
  %s0 = inlined_call_operand.vmem [shape: f32[8,128], index: 0, kind: input, shape index: {}]
  %s1 = inlined_call_operand.hbm [shape: f32[128,128], index: 1, kind: input, shape index: {}]
  %s2 = inlined_call_operand.vmem [shape: f32[1,128], index: 2, kind: input, shape index: {}]
  %s3 = inlined_call_operand.hbm [shape: f32[8,128], index: 3, kind: output, shape index: {}]
  %s4 = sld [smem:[#allocation0]]
  $region26: #{classifier_forward.1} parent=0
    _
  %s6 = ssub.s32 1, %s4
  %s7 = scalar_select 0, %s6, %s4
  $region1: #{classifier_forward.1} parent=0
    #allocation2 [shape = 'u8[65536]{0}', space=vmem, size = 0x10000, scoped, tag = 'input window, operand 1, single buffered']
    #allocation3 [shape = 's32[1]{0}', space=sflag, size = 0x4, scoped, tag = 'scoped memory for classifier_forward.1']
    #allocation4 [shape = 's32[1]{0}', space=sflag, size = 0x4, scoped, tag = 'scoped memory for classifier_forward.1']
    #allocation5 [shape = 'u8[4096]{0}', space=vmem, size = 0x1000, scoped, tag = 'output window, operand 0, single buffered']
    %8 = vsyncpa [#allocation3], 0
    %9 = vsyncpa [#allocation4], 0
    // Predicated region
    $region2: #{classifier_forward.1} parent=1 // pred_check
      _
    $region3: #{classifier_forward.1} parent=1 // pred_check_branch
      %11 = sbr.rel (0) target = $region5
    $region4: #{classifier_forward.1} parent=1 // pred_region
      _
    $region5: #{classifier_forward.1} parent=1 // pred_fallthru
      _
    // Predicated region
    $region6: #{classifier_forward.1} parent=1 // pred_check
      _
    $region7: #{classifier_forward.1} parent=1 // pred_check_branch
      %13 = sbr.rel (0) target = $region9
    $region8: #{classifier_forward.1} parent=1 // pred_region
      %s15 = ssub.s32 2048, 2048
      %16 = vsyncadd [#allocation3], %s15
      %s17 = sshll.u32 [#allocation2], 4
      %s18 = int_to_ptr.vmem [resolvable:$true] %s17
      %23 = dma.hbm_to_vmem [thread:$0]  %s1, 2048, %s18, [#allocation3], 128, 128, 8
    $region9: #{classifier_forward.1} parent=1 // pred_fallthru
      _
    // Predicated region
    $region10: #{classifier_forward.1} parent=1 // pred_check
      _
    $region11: #{classifier_forward.1} parent=1 // pred_check_branch
      %25 = sbr.rel (0) target = $region13
    $region12: #{classifier_forward.1} parent=1 // pred_region
      _
    $region13: #{classifier_forward.1} parent=1 // pred_fallthru
      _
    // Predicated region
    $region14: #{classifier_forward.1} parent=1 // pred_check
      _
    $region15: #{classifier_forward.1} parent=1 // pred_check_branch
      %27 = sbr.rel (0) target = $region17
    $region16: #{classifier_forward.1} parent=1 // pred_region
      %28 = dma.done [#allocation3], 2048
    $region17: #{classifier_forward.1} parent=1 // pred_fallthru
      _
    %v29 = vld [vmem:[%s0] sm:$0xff]
    %v30 = vld [vmem:[#allocation2] sm:$0xff]
    %v31 = vld [vmem:[#allocation2 + $0x8] sm:$0xff]
    %v32 = vld [vmem:[#allocation2 + $0x10] sm:$0xff]
    %v33 = vld [vmem:[#allocation2 + $0x18] sm:$0xff]
    %v34 = vld [vmem:[#allocation2 + $0x20] sm:$0xff]
    %v35 = vld [vmem:[#allocation2 + $0x28] sm:$0xff]
    %v36 = vld [vmem:[#allocation2 + $0x30] sm:$0xff]
    %v37 = vld [vmem:[#allocation2 + $0x38] sm:$0xff]
    %v38 = vld [vmem:[#allocation2 + $0x40] sm:$0xff]
    %v39 = vld [vmem:[#allocation2 + $0x48] sm:$0xff]
    %v40 = vld [vmem:[#allocation2 + $0x50] sm:$0xff]
    %v41 = vld [vmem:[#allocation2 + $0x58] sm:$0xff]
    %v42 = vld [vmem:[#allocation2 + $0x60] sm:$0xff]
    %v43 = vld [vmem:[#allocation2 + $0x68] sm:$0xff]
    %v44 = vld [vmem:[#allocation2 + $0x70] sm:$0xff]
    %v45 = vld [vmem:[#allocation2 + $0x78] sm:$0xff]
    %v46 = vld [vmem:[%s2] sm:$0x1]
    %v48 = vlaneseq
    %v49 = vshrl.u32 %v48, 7
    %v50 = vsub.s32 0, %v49
    %v51 = vrot.slane %v46, %v50
    %53 = vmatprep.subr.mxu0 0.0
    %54 = vmatpush1.msra.mxu0 %v30
    %55 = vmatprep.subr.mxu0 0.0
    %56 = vmatpush1.msra.mxu0 %v31
    %57 = vmatprep.subr.mxu0 0.0
    %58 = vmatpush1.msra.mxu0 %v32
    %59 = vmatprep.subr.mxu0 0.0
    %60 = vmatpush1.msra.mxu0 %v33
    %61 = vmatprep.subr.mxu0 0.0
    %62 = vmatpush1.msra.mxu0 %v34
    %63 = vmatprep.subr.mxu0 0.0
    %64 = vmatpush1.msra.mxu0 %v35
    %65 = vmatprep.subr.mxu0 0.0
    %66 = vmatpush1.msra.mxu0 %v36
    %67 = vmatprep.subr.mxu0 0.0
    %68 = vmatpush1.msra.mxu0 %v37
    %69 = vmatprep.subr.mxu0 0.0
    %70 = vmatpush1.msra.mxu0 %v38
    %71 = vmatprep.subr.mxu0 0.0
    %72 = vmatpush1.msra.mxu0 %v39
    %73 = vmatprep.subr.mxu0 0.0
    %74 = vmatpush1.msra.mxu0 %v40
    %75 = vmatprep.subr.mxu0 0.0
    %76 = vmatpush1.msra.mxu0 %v41
    %77 = vmatprep.subr.mxu0 0.0
    %78 = vmatpush1.msra.mxu0 %v42
    %79 = vmatprep.subr.mxu0 0.0
    %80 = vmatpush1.msra.mxu0 %v43
    %81 = vmatprep.subr.mxu0 0.0
    %82 = vmatpush1.msra.mxu0 %v44
    %83 = vmatprep.subr.mxu0 0.0
    %84 = vmatpush1.msra.mxu0 %v45
    %85 = vmatprep.subr.mxu0 0.0
    %86 = vmatpush1.msra.mxu0 0.0
    %87 = vmatprep.subr.mxu0 0.0
    %88 = vmatpush1.msra.mxu0 0.0
    %89 = vmatprep.subr.mxu0 0.0
    %90 = vmatpush1.msra.mxu0 0.0
    %91 = vmatprep.subr.mxu0 0.0
    %92 = vmatpush1.msra.mxu0 0.0
    %93 = vmatprep.subr.mxu0 0.0
    %94 = vmatpush1.msra.mxu0 0.0
    %95 = vmatprep.subr.mxu0 0.0
    %96 = vmatpush1.msra.mxu0 0.0
    %97 = vmatprep.subr.mxu0 0.0
    %98 = vmatpush1.msra.mxu0 0.0
    %99 = vmatprep.subr.mxu0 0.0
    %100 = vmatpush1.msra.mxu0 0.0
    %101 = vmatprep.subr.mxu0 0.0
    %102 = vmatpush1.msra.mxu0 0.0
    %103 = vmatprep.subr.mxu0 0.0
    %104 = vmatpush1.msra.mxu0 0.0
    %105 = vmatprep.subr.mxu0 0.0
    %106 = vmatpush1.msra.mxu0 0.0
    %107 = vmatprep.subr.mxu0 0.0
    %108 = vmatpush1.msra.mxu0 0.0
    %109 = vmatprep.subr.mxu0 0.0
    %110 = vmatpush1.msra.mxu0 0.0
    %111 = vmatprep.subr.mxu0 0.0
    %112 = vmatpush1.msra.mxu0 0.0
    %113 = vmatprep.subr.mxu0 0.0
    %114 = vmatpush1.msra.mxu0 0.0
    %115 = vmatprep.subr.mxu0 0.0
    %116 = vmatpush1.msra.mxu0 0.0
    %117 = vmatprep.mubr.f32.mxu0 0.0
    %118 = vmatmul.mubr.f32.gmra.mrb[0].mxu0 %v29
    %v119 = vpop.f32.mrb[0].mxu0
    %v120 = vadd.f32 %v51, %v119
    %v121 = vpop.f32.mrb[0].mxu0
    %122 = vdwg.mxu0
    %123 = vst [vmem:[#allocation5] sm:$0xff] %v120
    // Predicated region
    $region18: #{classifier_forward.1} parent=1 // pred_check
      _
    $region19: #{classifier_forward.1} parent=1 // pred_check_branch
      %125 = sbr.rel (0) target = $region21
    $region20: #{classifier_forward.1} parent=1 // pred_region
      %s127 = ssub.s32 128, 128
      %128 = vsyncadd [#allocation4], %s127
      %s130 = sshll.u32 [#allocation5], 4
      %s131 = int_to_ptr.vmem [resolvable:$true] %s130
      %133 = dma.vmem_to_hbm [thread:$0]  %s131, 128, %s3, [#allocation4]
    $region21: #{classifier_forward.1} parent=1 // pred_fallthru
      _
    // Predicated region
    $region22: #{classifier_forward.1} parent=1 // pred_check
      _
    $region23: #{classifier_forward.1} parent=1 // pred_check_branch
      %135 = sbr.rel (0) target = $region25
    $region24: #{classifier_forward.1} parent=1 // pred_region
      %136 = dma.done [#allocation4], 128
    $region25: #{classifier_forward.1} parent=1 // pred_fallthru
      _
    %137 = vsyncpa [#allocation3], 1
    %138 = vsyncpa [#allocation4], 1

</llo_original>
